<compile_context>
chip_gen: v5e
topology: v5e:2x2
jax: 0.10.0
libtpu: 0.0.40
codegen_flags: <defaults>
</compile_context>

<pallas_src>
import functools

import numpy as np
import jax
import jax.numpy as jnp
from jax.experimental import pallas as pl
from jax.experimental.pallas import tpu as pltpu


def _round_up(x: int, m: int) -> int:
    return ((x + m - 1) // m) * m


@functools.lru_cache(maxsize=None)
def _interp_matrix_np(n_knots: int, forecast_size: int, mode: str,
                      k_pad: int, f_pad: int) -> np.ndarray:
    """Padded interpolation matrix W s.t. forecast = knots_padded @ W.

    Matches torch.nn.functional.interpolate 1-D semantics:
      'nearest'             : src = floor(dst * n_knots / forecast_size)
      'linear' (align=False): src = (dst + 0.5) * scale - 0.5, clamped at 0
    Rows >= n_knots and cols >= forecast_size are zero padding.

    Only the NumPy matrix is cached (no device buffers held across backends).
    """
    W = np.zeros((k_pad, f_pad), dtype=np.float32)
    scale = n_knots / forecast_size
    if mode == "nearest":
        for j in range(forecast_size):
            i = min(int(np.floor(j * scale)), n_knots - 1)
            W[i, j] = 1.0
    elif mode == "linear":
        for j in range(forecast_size):
            real = (j + 0.5) * scale - 0.5
            real = max(real, 0.0)
            i0 = min(int(np.floor(real)), n_knots - 1)
            i1 = min(i0 + 1, n_knots - 1)
            l1 = real - i0
            W[i0, j] += 1.0 - l1
            W[i1, j] += l1
    else:
        raise NotImplementedError(f"interpolation_mode={mode!r}")
    return W


def _identity_basis_kernel(knots_ref, w_ref, forecast_ref):
    # [tb, k_pad] @ [k_pad, f_pad] -> [tb, f_pad] on the MXU, f32 accumulation.
    forecast_ref[...] = jnp.dot(
        knots_ref[...], w_ref[...], preferred_element_type=jnp.float32
    ).astype(forecast_ref.dtype)


def _choose_batch_tile(B: int, f_pad: int, k_pad: int, itemsize: int,
                       w_bytes: int):
    """Pick (tile_rows, num_blocks) for the batch axis.

    Constraints:
      * VMEM: double-buffered knots + output tiles + resident W stay under a
        conservative 10 MiB budget (safe for v5e's 16 MiB default scoped VMEM
        and v7x's 64 MiB physical VMEM).
      * per-step output slab ~4 MiB so per-step fixed overhead is amortized.
      * >= 2 blocks (ideally >= 4, even count) whenever B allows, so the DMA
        pipeline is active and both v7x TensorCores get work.
      * tile is a multiple of 8 rows (sublane rule) unless it equals B.
    """
    k_lanes = _round_up(max(k_pad, 128), 128)     # knots tile lanes in VMEM
    vmem_budget = 10 << 20
    per_row = 2 * (f_pad + k_lanes) * itemsize    # double-buffered in + out rows
    tb_vmem = max(8, ((vmem_budget - 2 * w_bytes) // per_row) // 8 * 8)
    tb_target = max(8, ((4 << 20) // (f_pad * itemsize)) // 8 * 8)
    tb_cap = min(tb_vmem, tb_target)

    if B < 16:
        return B, 1                               # full-dim block (always legal)

    want_blocks = 4 if B >= 32 else 2
    tb = max(8, min(tb_cap, _round_up(pl.cdiv(B, want_blocks), 8)))
    nb = pl.cdiv(B, tb)
    # Best effort: keep the block count even so v7x's two TCs stay balanced.
    if nb > 1 and nb % 2 == 1:
        tb_alt = max(8, _round_up(pl.cdiv(B, nb + 1), 8))
        if tb_alt <= tb_cap and pl.cdiv(B, tb_alt) % 2 == 0:
            tb = tb_alt
            nb = pl.cdiv(B, tb)
    return tb, nb


def identity_basis(theta, backcast_size: int, forecast_size: int,
                   interpolation_mode: str = "linear", use_pallas=None):
    if interpolation_mode not in ("linear", "nearest"):
        # TODO(synk): 'cubic' (bicubic) interpolation mode is not implemented;
        # fail loudly (consistent with _interp_matrix_np) rather than fake it.
        raise NotImplementedError(
            f"interpolation_mode={interpolation_mode!r} not supported")

    B, L = theta.shape
    n_knots = L - backcast_size
    assert n_knots >= 1 and forecast_size >= 1

    # ---- backcast: identity slice, no kernel needed.
    backcast = theta[:, :backcast_size]
    knots = theta[:, backcast_size:]

    itemsize = jnp.dtype(theta.dtype).itemsize
    # Contraction-dim padding follows dtype sublane packing (f32:8, bf16:16, 8-bit:32).
    sublane = 8 * max(1, 4 // itemsize)
    k_pad = _round_up(n_knots, sublane)
    f_pad = _round_up(forecast_size, 128)

    # W in the compute dtype: bf16 knots x bf16 W stays on the fast MXU path;
    # accumulation is still f32 via preferred_element_type.
    w_dtype = theta.dtype if itemsize < 4 else jnp.float32
    W_np = _interp_matrix_np(n_knots, forecast_size, interpolation_mode,
                             k_pad, f_pad)

    if use_pallas is None:
        # Tiny problems: pallas_call launch + operand materialization dominates;
        # a plain XLA dot fuses into surrounding ops and wins outright.
        use_pallas = B * f_pad * itemsize >= (1 << 17)     # >= 128 KiB output slab

    if not use_pallas:
        W_small = jnp.asarray(W_np[:n_knots, :forecast_size], dtype=w_dtype)
        forecast = jnp.dot(knots, W_small,
                           preferred_element_type=jnp.float32).astype(theta.dtype)
        return backcast, forecast

    # ---- Pallas path.
    if k_pad != n_knots:
        knots = jnp.pad(knots, ((0, 0), (0, k_pad - n_knots)))
    W = jnp.asarray(W_np, dtype=w_dtype)
    w_bytes = k_pad * f_pad * jnp.dtype(w_dtype).itemsize

    tb, num_blocks = _choose_batch_tile(B, f_pad, k_pad, itemsize, w_bytes)

    cost = pl.CostEstimate(
        flops=2 * B * k_pad * f_pad,
        transcendentals=0,
        # knots read is lane-padded to 128 in HBM/VMEM layouts.
        bytes_accessed=(B * max(k_pad, 128) * itemsize
                        + w_bytes
                        + B * f_pad * itemsize),
    )

    forecast_padded = pl.pallas_call(
        _identity_basis_kernel,
        out_shape=jax.ShapeDtypeStruct((B, f_pad), theta.dtype),
        grid=(num_blocks,),
        in_specs=[
            pl.BlockSpec((tb, k_pad), lambda i: (i, 0)),        # knots tile
            pl.BlockSpec((k_pad, f_pad), lambda i: (0, 0)),     # W stays resident
        ],
        out_specs=pl.BlockSpec((tb, f_pad), lambda i: (i, 0)),  # lane-dense slab
        compiler_params=pltpu.CompilerParams(
            dimension_semantics=("parallel",),                  # megacore sharding
        ),
        cost_estimate=cost,
    )(knots, W)

    forecast = forecast_padded[:, :forecast_size]
    return backcast, forecast


if __name__ == "__main__":
    def reference(theta, backcast_size, forecast_size, mode):
        n_knots = theta.shape[1] - backcast_size
        W = jnp.asarray(_interp_matrix_np(n_knots, forecast_size, mode,
                                          n_knots, forecast_size))
        return theta[:, :backcast_size], theta[:, backcast_size:] @ W

    # ---- Case 1: tiny problem -> auto fast path (plain fused XLA dot).
    B, bsz, fsz, nk = 8, 16, 12, 6
    theta = jax.random.normal(jax.random.PRNGKey(0), (B, bsz + nk), jnp.float32)
    bc, fc = identity_basis(theta, bsz, fsz, "linear")
    jax.block_until_ready((bc, fc))
    rb, rf = reference(theta, bsz, fsz, "linear")
    assert bc.shape == (B, bsz) and fc.shape == (B, fsz)
    assert jnp.allclose(bc, rb)
    assert jnp.allclose(fc, rf, atol=1e-5, rtol=1e-5)

    # ---- Case 2: Pallas path, multi-block grid with a partial last block.
    B, bsz, fsz, nk = 100, 96, 24, 12
    theta = jax.random.normal(jax.random.PRNGKey(0), (B, bsz + nk), jnp.float32)
    for mode in ("linear", "nearest"):
        bc, fc = identity_basis(theta, bsz, fsz, mode, use_pallas=True)
        jax.block_until_ready((bc, fc))
        rb, rf = reference(theta, bsz, fsz, mode)
        assert bc.shape == (B, bsz) and fc.shape == (B, fsz)
        assert jnp.allclose(bc, rb)
        assert jnp.allclose(fc, rf, atol=1e-5, rtol=1e-5)

    print("KERNEL_OK")
</pallas_src>

<mosaic_0001>
module attributes {stable_mosaic.version = 11 : i64} {
  func.func @_identity_basis_kernel(%arg0: i32, %arg1: memref<32x16xf32, #tpu.memory_space<vmem>>, %arg2: memref<16x128xf32, #tpu.memory_space<vmem>>, %arg3: memref<32x128xf32, #tpu.memory_space<vmem>>) attributes {dimension_semantics = [#tpu.dimension_semantics<parallel>], iteration_bounds = array<i64: 4>, scalar_prefetch = 0 : i64, scratch_operands = 0 : i64, tpu.core_type = #tpu.core_type<tc>, window_params = [{transform_indices = @transform_0, window_bounds = array<i64: 32, 16>}, {pipeline_mode = #tpu.pipeline_mode<synchronous>, transform_indices = @transform_1, window_bounds = array<i64: 16, 128>}, {transform_indices = @transform_2, window_bounds = array<i64: 32, 128>}]} {
    %c0 = arith.constant 0 : index
    %c0_0 = arith.constant 0 : index
    %0 = vector.load %arg1[%c0, %c0_0] : memref<32x16xf32, #tpu.memory_space<vmem>>, vector<32x16xf32>
    %c0_1 = arith.constant 0 : index
    %c0_2 = arith.constant 0 : index
    %1 = vector.load %arg2[%c0_1, %c0_2] : memref<16x128xf32, #tpu.memory_space<vmem>>, vector<16x128xf32>
    %cst = arith.constant dense<0.000000e+00> : vector<32x128xf32>
    %2 = tpu.matmul %0, %1, %cst {dimension_numbers = #tpu.dot_dimension_numbers<[1], [0], [0], [1], [0, 0, 1, 1], [], []>} : vector<32x16xf32>, vector<16x128xf32>, vector<32x128xf32> -> vector<32x128xf32>
    %c0_3 = arith.constant 0 : index
    %c0_4 = arith.constant 0 : index
    %3 = vector.load %arg3[%c0_3, %c0_4] : memref<32x128xf32, #tpu.memory_space<vmem>>, vector<32x128xf32>
    tpu.vector_store %arg3[%c0_3, %c0_4], %2 {strides = array<i32>} : memref<32x128xf32, #tpu.memory_space<vmem>>, vector<32x128xf32>,
    return
  }
  func.func @transform_0(%arg0: i32) -> (i32, i32) {
    %c0_i32 = arith.constant 0 : i32
    %c0_i32_0 = arith.constant 0 : i32
    return %arg0, %c0_i32 : i32, i32
  }
  func.func @transform_1(%arg0: i32) -> (i32, i32) {
    %c0_i32 = arith.constant 0 : i32
    %c0_i32_0 = arith.constant 0 : i32
    %c0_i32_1 = arith.constant 0 : i32
    return %c0_i32, %c0_i32_0 : i32, i32
  }
  func.func @transform_2(%arg0: i32) -> (i32, i32) {
    %c0_i32 = arith.constant 0 : i32
    %c0_i32_0 = arith.constant 0 : i32
    return %arg0, %c0_i32 : i32, i32
  }
}

</mosaic_0001>

<llo_original>
// kernel: tpu_custom_call.1
$region0: #{tpu_custom_call.1}
  #allocation0 [shape = 'u32[]', space=smem, size = 0x4, offset = 0x4, fixed_abs, tag = 'smem constant byte address 0x4 - core index']
  #allocation1 [shape = 'u32[72,128]{1,0:T(1,128)}', space=vmem, size = 0x9000, scoped, tag = 'internal scratch']
  %s0 = inlined_call_operand.vmem [shape: f32[100,16], index: 0, kind: input, shape index: {}]
  %s1 = inlined_call_operand.vmem [shape: f32[16,128], index: 1, kind: input, shape index: {}]
  %s2 = inlined_call_operand.hbm [shape: f32[100,128], index: 2, kind: output, shape index: {}]
  %s3 = sld [smem:[#allocation0]]
  $region41: #{tpu_custom_call.1} parent=0
    _
  %s5 = ssub.s32 1, %s3
  %s6 = scalar_select 0, %s5, %s3
  $region1: #{tpu_custom_call.1} parent=0
    #allocation2 [shape = 'u8[32768]{0}', space=vmem, size = 0x8000, scoped, tag = 'output window, operand 0']
    #allocation3 [shape = 's32[2]{0}', space=sflag, size = 0x8, scoped, tag = 'scoped memory for tpu_custom_call.1']
    %7 = vsyncpa [#allocation3], 0
    %s8 = scalar_lea.sflag [#allocation3], 1
    %9 = vsyncpa %s8, 0
    loop: start=0, step=1, limit=6
    $region2: #{tpu_custom_call.1} parent=1 // loop_pre_header
      _
    $region3: #{tpu_custom_call.1} parent=1 // loop_header
      %s11 = sphi 0, %s15
      %p12 = scmp.ge.s32.totalorder %s11, 6
      %s21 = sphi 0, %s23
      %s24 = sphi 0, %s21
      %s25 = sphi 0, %s24
      %s41 = sphi 0, %s25
      %s45 = sphi 0, %s45
      %s47 = sphi 0, %s45
      %s48 = sphi 0, %s47
      %s62 = sphi 0, %s48
      %s68 = sphi 0, %s70
      %s71 = sphi 0, %s68
      %s72 = sphi 0, %s71
      %s88 = sphi 0, %s72
    $region4: #{tpu_custom_call.1} parent=1 // loop_header_branch
      %14 = sbr.rel (%p12) target = $region8
    $region5: #{tpu_custom_call.1} parent=1 // loop_body
      %s16 = ssub.s32 %s11, 1
      %s17 = ssub.s32 %s11, 2
      %s18 = sadd.s32 %s11, 1
      %s19 = ssub.s32 %s11, %s18
      %p20 = scmp.eq.s32.totalorder %s19, 0
      %s22 = sadd.s32 %s21, 1
      %s23 = scalar_select %p20, %s21, %s22
      %p26 = pneg %p20
      %p27 = scmp.eq.s32.totalorder %s11, 3
      %p28 = por %p26, %p27
      %p29 = scmp.ne.s32.totalorder %s21, %s24
      %p30 = scmp.eq.s32.totalorder %s11, 0
      %p31 = por %p29, %p30
      %p32 = scmp.ne.s32.totalorder %s21, %s24
      %p33 = scmp.eq.s32.totalorder %s16, 3
      %p34 = por %p32, %p33
      %p35 = scmp.ne.s32.totalorder %s24, %s25
      %p36 = scmp.eq.s32.totalorder %s16, 0
      %p37 = por %p35, %p36
      %p38 = scmp.ne.s32.totalorder %s24, %s25
      %p39 = scmp.eq.s32.totalorder %s17, 3
      %p40 = por %p38, %p39
      %p42 = scmp.ne.s32.totalorder %s25, %s41
      %p43 = scmp.eq.s32.totalorder %s17, 0
      %p44 = por %p42, %p43
      %s46 = sadd.s32 %s45, 1
      %p49 = scmp.eq.s32.totalorder %s11, 3
      %p50 = scmp.ne.s32.totalorder %s45, %s47
      %p51 = scmp.eq.s32.totalorder %s11, 0
      %p52 = por %p50, %p51
      %p53 = scmp.ne.s32.totalorder %s45, %s47
      %p54 = scmp.eq.s32.totalorder %s16, 3
      %p55 = por %p53, %p54
      %p56 = scmp.ne.s32.totalorder %s47, %s48
      %p57 = scmp.eq.s32.totalorder %s16, 0
      %p58 = por %p56, %p57
      %p59 = scmp.ne.s32.totalorder %s47, %s48
      %p60 = scmp.eq.s32.totalorder %s17, 3
      %p61 = por %p59, %p60
      %p63 = scmp.ne.s32.totalorder %s48, %s62
      %p64 = scmp.eq.s32.totalorder %s17, 0
      %p65 = por %p63, %p64
      %s66 = ssub.s32 %s11, %s18
      %p67 = scmp.eq.s32.totalorder %s66, 0
      %s69 = sadd.s32 %s68, 1
      %s70 = scalar_select %p67, %s68, %s69
      %p73 = pneg %p67
      %p74 = scmp.eq.s32.totalorder %s11, 3
      %p75 = por %p73, %p74
      %p76 = scmp.ne.s32.totalorder %s68, %s71
      %p77 = scmp.eq.s32.totalorder %s11, 0
      %p78 = por %p76, %p77
      %p79 = scmp.ne.s32.totalorder %s68, %s71
      %p80 = scmp.eq.s32.totalorder %s16, 3
      %p81 = por %p79, %p80
      %p82 = scmp.ne.s32.totalorder %s71, %s72
      %p83 = scmp.eq.s32.totalorder %s16, 0
      %p84 = por %p82, %p83
      %p85 = scmp.ne.s32.totalorder %s71, %s72
      %p86 = scmp.eq.s32.totalorder %s17, 3
      %p87 = por %p85, %p86
      %p89 = scmp.ne.s32.totalorder %s72, %s88
      %p90 = scmp.eq.s32.totalorder %s17, 0
      %p91 = por %p89, %p90
      %p92 = scmp.le.s32.totalorder 1, %s11
      %p93 = scmp.lt.s32.totalorder %s11, 5
      %p94 = pnand %p92, %p93
      %p95 = pneg %p94
      // Predicated region
      $region9: #{tpu_custom_call.1} parent=5 // pred_check
        _
      $region10: #{tpu_custom_call.1} parent=5 // pred_check_branch
        %97 = sbr.rel (%p94) target = $region12
      $region11: #{tpu_custom_call.1} parent=5 // pred_region
        %s98 = ssub.s32 %s11, 1
        // Predicated region
        $region13: #{tpu_custom_call.1} parent=11 // pred_check
          %p99 = pneg %p58
        $region14: #{tpu_custom_call.1} parent=11 // pred_check_branch
          %101 = sbr.rel (%p99) target = $region16
        $region15: #{tpu_custom_call.1} parent=11 // pred_region
          _
        $region16: #{tpu_custom_call.1} parent=11 // pred_fallthru
          _
      $region12: #{tpu_custom_call.1} parent=5 // pred_fallthru
        _
      %p102 = scmp.lt.s32.totalorder %s11, 4
      // Predicated region
      $region17: #{tpu_custom_call.1} parent=5 // pred_check
        %p103 = pneg %p102
      $region18: #{tpu_custom_call.1} parent=5 // pred_check_branch
        %105 = sbr.rel (%p103) target = $region20
      $region19: #{tpu_custom_call.1} parent=5 // pred_region
        // Predicated region
        $region21: #{tpu_custom_call.1} parent=19 // pred_check
          %p106 = pneg %p31
        $region22: #{tpu_custom_call.1} parent=19 // pred_check_branch
          %108 = sbr.rel (%p106) target = $region24
        $region23: #{tpu_custom_call.1} parent=19 // pred_region
          %s109 = smul.u32 4, %s11
          %s110 = ssub.s32 13, %s109
          %p111 = scmp.lt.s32.totalorder %s110, 4
          %s112 = scalar_select %p111, %s110, 4
          %s113 = smul.u32 8, %s112
          %p114 = scmp.lt.s32.totalorder %s109, 12
          %s115 = scalar_select %p114, %s109, 12
          %s116 = smul.addr %s115, 8
          %s117 = scalar_lea.vmem %s0, %s116
          %s118 = smul.u32 4, %s11
          %s119 = ssub.s32 13, %s118
          %p120 = scmp.lt.s32.totalorder %s119, 4
          %s121 = scalar_select %p120, %s119, 4
          %s122 = smul.u32 8, %s121
        $region24: #{tpu_custom_call.1} parent=19 // pred_fallthru
          _
      $region20: #{tpu_custom_call.1} parent=5 // pred_fallthru
        _
      %p123 = scmp.le.s32.totalorder 1, %s11
      %p124 = scmp.lt.s32.totalorder %s11, 5
      %p125 = pnand %p123, %p124
      %p126 = pneg %p125
      // Predicated region
      $region25: #{tpu_custom_call.1} parent=5 // pred_check
        _
      $region26: #{tpu_custom_call.1} parent=5 // pred_check_branch
        %128 = sbr.rel (%p125) target = $region28
      $region27: #{tpu_custom_call.1} parent=5 // pred_region
        %s129 = ssub.s32 %s11, 1
        %s130 = smul.u32 4, %s16
        %s131 = ssub.s32 13, %s130
        %p132 = scmp.lt.s32.totalorder %s131, 4
        %s133 = scalar_select %p132, %s131, 4
        %s134 = smul.u32 8, %s133
        %p135 = scmp.lt.s32.totalorder %s130, 12
        %s136 = scalar_select %p135, %s130, 12
        %s137 = smul.addr %s136, 8
        %s138 = scalar_lea.vmem %s0, %s137
        %p139 = pneg %p37
        %p140 = pneg %p34
        %p141 = pneg %p58
        %p142 = pneg %p55
        %p143 = pneg %p84
        %p144 = pneg %p81
        %s145 = sand.u32 %s71, 1
        %s146 = scalar_lea.sflag [#allocation3], %s145
        %s147 = sand.u32 %s71, 1
        %s148 = smul.addr %s147, 32
        %s149 = scalar_lea.vmem [#allocation2], %s148
        %s150 = smul.u32 4, %s16
        %s151 = ssub.s32 13, %s150
        %p152 = scmp.lt.s32.totalorder %s151, 4
        %s153 = scalar_select %p152, %s151, 4
        %s154 = smul.u32 8, %s153
        %p155 = scmp.lt.s32.totalorder %s150, 12
        %s156 = scalar_select %p155, %s150, 12
        %s157 = smul.addr %s156, 8
        %s158 = scalar_lea.vmem %s0, %s157
        %s159 = smul.u32 4, %s16
        %s160 = ssub.s32 13, %s159
        %p161 = scmp.lt.s32.totalorder %s160, 4
        %s162 = scalar_select %p161, %s160, 4
        %s163 = smul.u32 8, %s162
        %s164 = smul.u32 4, %s16
        %s165 = ssub.s32 13, %s164
        %p166 = scmp.lt.s32.totalorder %s165, 4
        %s167 = scalar_select %p166, %s165, 4
        %s168 = smul.u32 8, %s167
        %v169 = vld [vmem:[%s158] sm:$0xff]
        %v170 = vld [vmem:[%s158 + $0x8] sm:$0xff]
        %v171 = vld [vmem:[%s158 + $0x10] sm:$0xff]
        %v172 = vld [vmem:[%s158 + $0x18] sm:$0xff]
        %v173 = vld [vmem:[%s1] sm:$0xff]
        %v174 = vld [vmem:[%s1 + $0x8] sm:$0xff]
        %vm175 = vcmask 130048
        %v177 = vsel %vm175, %v169, 0
        %v180 = vsel %vm175, %v170, 0
        %v183 = vsel %vm175, %v171, 0
        %v186 = vsel %vm175, %v172, 0
        %188 = vmatpush.msra.mxu0 0.0
        %189 = vmatpush.msra.mxu0 0.0
        %190 = vmatpush.msra.mxu0 0.0
        %191 = vmatpush.msra.mxu0 0.0
        %192 = vmatpush.msra.mxu0 0.0
        %193 = vmatpush.msra.mxu0 0.0
        %194 = vmatpush.msra.mxu0 0.0
        %195 = vmatpush.msra.mxu0 0.0
        %196 = vmatpush.msra.mxu0 0.0
        %197 = vmatpush.msra.mxu0 0.0
        %198 = vmatpush.msra.mxu0 0.0
        %199 = vmatpush.msra.mxu0 0.0
        %200 = vmatpush.msra.mxu0 0.0
        %201 = vmatpush.msra.mxu0 0.0
        %202 = vmatpush.msra.mxu0 %v174
        %203 = vmatpush.msra.mxu0 %v173
        %204 = vmatmul.f32.gmra.mxu0 %v177
        %v205 = vpop.f32.mrf.mxu0
        %v206 = vadd.f32 0.0, %v205
        %207 = vmatmul.f32.gmra.mxu0 %v180
        %v208 = vpop.f32.mrf.mxu0
        %v209 = vadd.f32 0.0, %v208
        %210 = vmatmul.f32.gmra.mxu0 %v183
        %v211 = vpop.f32.mrf.mxu0
        %v212 = vadd.f32 0.0, %v211
        %213 = vmatmul.f32.gmra.mxu0 %v186
        %v214 = vpop.f32.mrf.mxu0
        %v215 = vadd.f32 0.0, %v214
        %216 = vdwg.mxu0
        %217 = vst [vmem:[%s149] sm:$0xff] %v206
        %218 = vst [vmem:[%s149 + $0x8] sm:$0xff] %v209
        %219 = vst [vmem:[%s149 + $0x10] sm:$0xff] %v212
        %220 = vst [vmem:[%s149 + $0x18] sm:$0xff] %v215
        %s221 = sand.u32 %s71, 1
        %s222 = scalar_lea.sflag [#allocation3], %s221
        %s223 = sand.u32 %s71, 1
        %s224 = smul.addr %s223, 32
        %s225 = scalar_lea.vmem [#allocation2], %s224
        // Predicated region
        $region29: #{tpu_custom_call.1} parent=27 // pred_check
          %p226 = pneg %p81
        $region30: #{tpu_custom_call.1} parent=27 // pred_check_branch
          %228 = sbr.rel (%p226) target = $region32
        $region31: #{tpu_custom_call.1} parent=27 // pred_region
          %s229 = smul.u32 4, %s16
          %s230 = ssub.s32 13, %s229
          %p231 = scmp.lt.s32.totalorder %s230, 4
          %s232 = scalar_select %p231, %s230, 4
          %s233 = smul.u32 8, %s232
          %s234 = ssub.s32 32, %s233
          %s235 = sshll.u32 %s234, 4
          %236 = vsyncadd %s222, %s235
          %p237 = scmp.ne.s32.totalorder 0, %s233
          %s238 = smul.addr %s229, 8
          %s239 = scalar_lea.hbm %s2, %s238
          %s240 = smul.u32 8, %s232
          %s241 = sshll.u32 %s225, 4
          %s242 = int_to_ptr.vmem [resolvable:$true] %s241
          %s243 = sshll.u32 %s239, 4
          %s244 = int_to_ptr.hbm [resolvable:$true] %s243
          %s245 = sshll.u32 %s240, 4
          %249 = dma.vmem_to_hbm [thread:$0]  (%p237), %s242, %s245, %s244, %s222, 128, 128, 8
        $region32: #{tpu_custom_call.1} parent=27 // pred_fallthru
          _
      $region28: #{tpu_custom_call.1} parent=5 // pred_fallthru
        _
      %p250 = scmp.le.s32.totalorder 2, %s11
      // Predicated region
      $region33: #{tpu_custom_call.1} parent=5 // pred_check
        %p251 = pneg %p250
      $region34: #{tpu_custom_call.1} parent=5 // pred_check_branch
        %253 = sbr.rel (%p251) target = $region36
      $region35: #{tpu_custom_call.1} parent=5 // pred_region
        %s254 = ssub.s32 %s11, 2
        // Predicated region
        $region37: #{tpu_custom_call.1} parent=35 // pred_check
          %p255 = pneg %p87
        $region38: #{tpu_custom_call.1} parent=35 // pred_check_branch
          %257 = sbr.rel (%p255) target = $region40
        $region39: #{tpu_custom_call.1} parent=35 // pred_region
          %s258 = sand.u32 %s72, 1
          %s259 = scalar_lea.sflag [#allocation3], %s258
          %s260 = sand.u32 %s72, 1
          %s261 = smul.addr %s260, 32
          %s262 = scalar_lea.vmem [#allocation2], %s261
          %264 = dma.done %s259, 512
        $region40: #{tpu_custom_call.1} parent=35 // pred_fallthru
          _
      $region36: #{tpu_custom_call.1} parent=5 // pred_fallthru
        _
    $region6: #{tpu_custom_call.1} parent=1 // loop_footer
      %s15 = sadd.s32 1, %s11
    $region7: #{tpu_custom_call.1} parent=1 // loop_footer_branch
      %10 = sbr.rel target = $region3
    $region8: #{tpu_custom_call.1} parent=1 // loop_exit
      _
    %265 = vsyncpa [#allocation3], 1
    %s266 = scalar_lea.sflag [#allocation3], 1
    %267 = vsyncpa %s266, 1

</llo_original>
